<compile_context>
chip_gen: v5e
topology: v5e:2x2
jax: 0.10.0
libtpu: 0.0.40
codegen_flags: <defaults>
</compile_context>

<pallas_src>
import functools

import jax
import jax.numpy as jnp
from jax.experimental import pallas as pl
from jax.experimental.pallas import tpu as pltpu


# ----------------------------- config (synthetic) -----------------------------
VOCAB_SIZE = 100
HIDDEN_SIZE = 32
MAX_POSITION_EMBEDDINGS = 64
TYPE_VOCAB_SIZE = 2
PAD_TOKEN_ID = 1
LAYER_NORM_EPS = 1e-5

BATCH = 2
SEQ = 8

# Row-tile cap once B*S grows beyond a single grid step.  A 1024-row tile costs
# ~0.7 MB for the bf16/f32 sel tensor + 128 KB output + ~22 KB table, far inside
# even v7x's 64 MiB VMEM, and fewer grid steps amortise the ~0.35 us/step
# pipeline overhead.
MAX_TILE_ROWS = 1024
# When the problem is big enough, keep >= 2 grid steps on the "parallel" row
# axis so v7x's two TensorCores are both used (no effect on v5e/v6e: 1 TC).
MIN_PARALLEL_STEPS = 2


# --------------------------------- kernel ------------------------------------
def _embeddings_kernel(idx_ref, table_ref, gamma_ref, beta_ref, out_ref,
                       *, hidden, eps):
    t = idx_ref.shape[0]
    v_total = table_ref.shape[0]

    idx = idx_ref[...]                                       # (T, 3) fused row ids
    lanes = jax.lax.broadcasted_iota(jnp.int32, (t, v_total), 1)

    # "Three-hot" selection matrix: the three table sections are disjoint
    # (offsets folded in the wrapper), so the OR of the equality masks has
    # exactly one hit per section and one MXU pass produces
    # word + position + token-type already summed.  bf16 is exact for 0/1 and
    # halves the sel tensor's vreg footprint; the f32 table keeps accumulation
    # exact (preferred_element_type=f32).
    sel = ((lanes == idx[:, 0:1]) |
           (lanes == idx[:, 1:2]) |
           (lanes == idx[:, 2:3])).astype(jnp.bfloat16)
    x = jnp.dot(sel, table_ref[...],
                preferred_element_type=jnp.float32)          # (T, H)

    # LayerNorm over the hidden dim, f32 on the VPU (v5e has no bf16 VPU path).
    # One-pass statistics: sum(x) and sum(x*x) are independent XLU reductions,
    # avoiding the dependent second pass of the centered formulation.
    inv_h = jnp.float32(1.0 / hidden)
    s1 = jnp.sum(x, axis=-1, keepdims=True)
    s2 = jnp.sum(x * x, axis=-1, keepdims=True)
    mean = s1 * inv_h
    var = s2 * inv_h - mean * mean
    y = (x - mean) * jax.lax.rsqrt(var + eps) * gamma_ref[...] + beta_ref[...]

    # TODO(synk): at toy H=32 this store is a 25%-lane-occupancy masked vst; at
    # production H=768 (6x128 lanes) it is lane-dense automatically.  An
    # in-kernel repack to (T//4, 128) was deliberately not done here to avoid
    # sublane->lane relayout cost/risk at these shapes.
    out_ref[...] = y.astype(out_ref.dtype)


# -------------------------------- wrapper ------------------------------------
def build_fused_table(word_table, pos_table, type_table):
    """Fused [word | position | token-type] table, rows padded to a sublane
    multiple (padding rows are never selected).  Build ONCE and reuse -- hoisted
    out of the per-call path so no per-call concat traffic over the table."""
    h = word_table.shape[1]
    combined = jnp.concatenate([word_table, pos_table, type_table], axis=0)
    pad_rows = (-combined.shape[0]) % 8
    if pad_rows:
        combined = jnp.concatenate(
            [combined, jnp.zeros((pad_rows, h), combined.dtype)], axis=0)
    return combined


def _choose_tile(n):
    if n <= MAX_TILE_ROWS:
        return n
    # Prefer a multiple of 256 rows (MXU M-dim) that divides n and leaves at
    # least MIN_PARALLEL_STEPS grid steps (v7x dual TensorCore).
    cap = min(MAX_TILE_ROWS, max(256, (n // MIN_PARALLEL_STEPS) // 256 * 256))
    for cand in range(cap, 0, -256):
        if n % cand == 0:
            return cand
    # Fallback: largest multiple of 8 that divides n.
    start = (min(MAX_TILE_ROWS, n) // 8) * 8
    for cand in range(start, 0, -8):
        if n % cand == 0:
            return cand
    return n  # TODO(synk): ragged last tile for awkward n


def roberta_embeddings(input_ids, token_type_ids, position_ids,
                       fused_table, gamma, beta,
                       *, word_rows, pos_rows, type_rows,
                       pad_token_id=PAD_TOKEN_ID, eps=LAYER_NORM_EPS):
    b, s = input_ids.shape
    h = fused_table.shape[1]
    n = b * s

    tile = _choose_tile(n)
    assert n % tile == 0 and tile % 8 == 0, (n, tile)
    grid = (n // tile,)

    # Single fused (n, 3) int32 index stream with the fused-table offsets
    # already folded in (one DMA stream instead of three; no adds in-kernel).
    # Each section is clamped to its own row range (cheap bounds guard).
    word_idx = jnp.clip(input_ids.astype(jnp.int32), 0, word_rows - 1)
    pos_idx = jnp.clip(position_ids.astype(jnp.int32) + (pad_token_id + 1),
                       0, pos_rows - 1) + word_rows
    type_idx = jnp.clip(token_type_ids.astype(jnp.int32), 0, type_rows - 1) \
        + (word_rows + pos_rows)
    fused_idx = jnp.stack([word_idx, pos_idx, type_idx], axis=-1).reshape(n, 3)

    gamma2d = gamma.reshape(1, h).astype(jnp.float32)
    beta2d = beta.reshape(1, h).astype(jnp.float32)

    kernel = functools.partial(_embeddings_kernel, hidden=h, eps=eps)

    def row_map(i):
        return (i, 0)

    def full_map(i):
        return (0, 0)

    out = pl.pallas_call(
        kernel,
        out_shape=jax.ShapeDtypeStruct((n, h), jnp.float32),
        grid=grid,
        in_specs=[
            pl.BlockSpec((tile, 3), row_map),            # fused row indices
            pl.BlockSpec(fused_table.shape, full_map),   # fused embedding table
            pl.BlockSpec((1, h), full_map),              # LN gamma
            pl.BlockSpec((1, h), full_map),              # LN beta
        ],
        out_specs=pl.BlockSpec((tile, h), row_map),
        compiler_params=pltpu.CompilerParams(
            dimension_semantics=("parallel",)),
    )(fused_idx, fused_table, gamma2d, beta2d)

    return out.reshape(b, s, h)


# ------------------------------ reference (jnp) -------------------------------
def roberta_embeddings_ref(input_ids, token_type_ids, position_ids,
                           word_table, pos_table, type_table, gamma, beta,
                           *, pad_token_id=PAD_TOKEN_ID, eps=LAYER_NORM_EPS):
    w = word_table[input_ids]
    t = type_table[token_type_ids]
    p = pos_table[pad_token_id + 1 + position_ids]
    x = w + t + p
    mean = jnp.mean(x, axis=-1, keepdims=True)
    var = jnp.mean((x - mean) ** 2, axis=-1, keepdims=True)
    return (x - mean) * jax.lax.rsqrt(var + eps) * gamma + beta


# --------------------------------- main --------------------------------------
if __name__ == "__main__":
    key = jax.random.PRNGKey(0)
    k_w, k_p, k_t, k_ids = jax.random.split(key, 4)

    # Deterministic synthetic parameters (shapes from the module's __init__).
    word_table = jax.random.normal(
        k_w, (VOCAB_SIZE, HIDDEN_SIZE), dtype=jnp.float32) * 0.02
    pos_table = jax.random.normal(
        k_p, (MAX_POSITION_EMBEDDINGS + 2, HIDDEN_SIZE), dtype=jnp.float32) * 0.02
    type_table = jax.random.normal(
        k_t, (TYPE_VOCAB_SIZE, HIDDEN_SIZE), dtype=jnp.float32) * 0.02
    gamma = jnp.ones((HIDDEN_SIZE,), dtype=jnp.float32)
    beta = jnp.zeros((HIDDEN_SIZE,), dtype=jnp.float32)

    # Fused table built once (hoisted out of the per-call path).
    fused_table = build_fused_table(word_table, pos_table, type_table)
    fused_table = jax.block_until_ready(fused_table)

    # Example inputs.
    input_ids = jax.random.randint(k_ids, (BATCH, SEQ), 0, VOCAB_SIZE,
                                   dtype=jnp.int32)
    token_type_ids = jnp.zeros((BATCH, SEQ), dtype=jnp.int32)
    position_ids = jnp.broadcast_to(jnp.arange(SEQ, dtype=jnp.int32),
                                    (BATCH, SEQ))

    out = roberta_embeddings(
        input_ids, token_type_ids, position_ids,
        fused_table, gamma, beta,
        word_rows=word_table.shape[0],
        pos_rows=pos_table.shape[0],
        type_rows=type_table.shape[0])
    out = jax.block_until_ready(out)

    ref = roberta_embeddings_ref(input_ids, token_type_ids, position_ids,
                                 word_table, pos_table, type_table,
                                 gamma, beta)
    assert out.shape == (BATCH, SEQ, HIDDEN_SIZE)
    assert jnp.allclose(out, ref, atol=1e-5, rtol=1e-5)

    print("KERNEL_OK")
</pallas_src>

<mosaic_0001>
module attributes {stable_mosaic.version = 11 : i64} {
  func.func @_embeddings_kernel(%arg0: i32, %arg1: memref<16x3xi32, #tpu.memory_space<vmem>>, %arg2: memref<168x32xf32, #tpu.memory_space<vmem>>, %arg3: memref<1x32xf32, #tpu.memory_space<vmem>>, %arg4: memref<1x32xf32, #tpu.memory_space<vmem>>, %arg5: memref<16x32xf32, #tpu.memory_space<vmem>>) attributes {dimension_semantics = [#tpu.dimension_semantics<parallel>], iteration_bounds = array<i64: 1>, scalar_prefetch = 0 : i64, scratch_operands = 0 : i64, tpu.core_type = #tpu.core_type<tc>, window_params = [{transform_indices = @transform_0, window_bounds = array<i64: 16, 3>}, {pipeline_mode = #tpu.pipeline_mode<synchronous>, transform_indices = @transform_1, window_bounds = array<i64: 168, 32>}, {pipeline_mode = #tpu.pipeline_mode<synchronous>, transform_indices = @transform_2, window_bounds = array<i64: 1, 32>}, {pipeline_mode = #tpu.pipeline_mode<synchronous>, transform_indices = @transform_3, window_bounds = array<i64: 1, 32>}, {transform_indices = @transform_4, window_bounds = array<i64: 16, 32>}]} {
    %c0 = arith.constant 0 : index
    %c0_0 = arith.constant 0 : index
    %0 = vector.load %arg1[%c0, %c0_0] : memref<16x3xi32, #tpu.memory_space<vmem>>, vector<16x3xi32>
    %1 = tpu.iota {dimensions = array<i32: 1>} : vector<16x168xi32>
    %2 = vector.extract_strided_slice %0 {offsets = [0, 0], sizes = [16, 1], strides = [1, 1]} : vector<16x3xi32> to vector<16x1xi32>
    %3 = vector.broadcast %2 : vector<16x1xi32> to vector<16x168xi32>
    %4 = arith.cmpi eq, %1, %3 : vector<16x168xi32>
    %5 = vector.extract_strided_slice %0 {offsets = [0, 1], sizes = [16, 1], strides = [1, 1]} : vector<16x3xi32> to vector<16x1xi32>
    %6 = vector.broadcast %5 : vector<16x1xi32> to vector<16x168xi32>
    %7 = arith.cmpi eq, %1, %6 : vector<16x168xi32>
    %8 = arith.ori %4, %7 : vector<16x168xi1>
    %9 = vector.extract_strided_slice %0 {offsets = [0, 2], sizes = [16, 1], strides = [1, 1]} : vector<16x3xi32> to vector<16x1xi32>
    %10 = vector.broadcast %9 : vector<16x1xi32> to vector<16x168xi32>
    %11 = arith.cmpi eq, %1, %10 : vector<16x168xi32>
    %12 = arith.ori %8, %11 : vector<16x168xi1>
    %13 = arith.extui %12 : vector<16x168xi1> to vector<16x168xi32>
    %14 = arith.sitofp %13 : vector<16x168xi32> to vector<16x168xf32>
    %15 = arith.truncf %14 : vector<16x168xf32> to vector<16x168xbf16>
    %c0_1 = arith.constant 0 : index
    %c0_2 = arith.constant 0 : index
    %16 = vector.load %arg2[%c0_1, %c0_2] : memref<168x32xf32, #tpu.memory_space<vmem>>, vector<168x32xf32>
    %cst = arith.constant dense<0.000000e+00> : vector<16x32xf32>
    %17 = tpu.matmul %15, %16, %cst {dimension_numbers = #tpu.dot_dimension_numbers<[1], [0], [0], [1], [0, 0, 1, 1], [], []>} : vector<16x168xbf16>, vector<168x32xf32>, vector<16x32xf32> -> vector<16x32xf32>
    %cst_3 = arith.constant dense<0.000000e+00> : vector<16xf32>
    %18 = vector.multi_reduction <add>, %17, %cst_3 [1] : vector<16x32xf32> to vector<16xf32>
    %19 = vector.shape_cast %18 : vector<16xf32> to vector<16x1xf32>
    %20 = arith.mulf %17, %17 : vector<16x32xf32>
    %cst_4 = arith.constant dense<0.000000e+00> : vector<16xf32>
    %21 = vector.multi_reduction <add>, %20, %cst_4 [1] : vector<16x32xf32> to vector<16xf32>
    %22 = vector.shape_cast %21 : vector<16xf32> to vector<16x1xf32>
    %cst_5 = arith.constant 3.125000e-02 : f32
    %23 = vector.broadcast %cst_5 : f32 to vector<16x1xf32>
    %24 = arith.mulf %19, %23 : vector<16x1xf32>
    %cst_6 = arith.constant 3.125000e-02 : f32
    %25 = vector.broadcast %cst_6 : f32 to vector<16x1xf32>
    %26 = arith.mulf %22, %25 : vector<16x1xf32>
    %27 = arith.mulf %24, %24 : vector<16x1xf32>
    %28 = arith.subf %26, %27 : vector<16x1xf32>
    %29 = vector.broadcast %24 : vector<16x1xf32> to vector<16x32xf32>
    %30 = arith.subf %17, %29 : vector<16x32xf32>
    %cst_7 = arith.constant 9.99999974E-6 : f32
    %31 = vector.broadcast %cst_7 : f32 to vector<16x1xf32>
    %32 = arith.addf %28, %31 : vector<16x1xf32>
    %33 = math.rsqrt %32 : vector<16x1xf32>
    %34 = vector.broadcast %33 : vector<16x1xf32> to vector<16x32xf32>
    %35 = arith.mulf %30, %34 : vector<16x32xf32>
    %c0_8 = arith.constant 0 : index
    %c0_9 = arith.constant 0 : index
    %36 = vector.load %arg3[%c0_8, %c0_9] : memref<1x32xf32, #tpu.memory_space<vmem>>, vector<1x32xf32>
    %37 = vector.broadcast %36 : vector<1x32xf32> to vector<16x32xf32>
    %38 = arith.mulf %35, %37 : vector<16x32xf32>
    %c0_10 = arith.constant 0 : index
    %c0_11 = arith.constant 0 : index
    %39 = vector.load %arg4[%c0_10, %c0_11] : memref<1x32xf32, #tpu.memory_space<vmem>>, vector<1x32xf32>
    %40 = vector.broadcast %39 : vector<1x32xf32> to vector<16x32xf32>
    %41 = arith.addf %38, %40 : vector<16x32xf32>
    %c0_12 = arith.constant 0 : index
    %c0_13 = arith.constant 0 : index
    %42 = vector.load %arg5[%c0_12, %c0_13] : memref<16x32xf32, #tpu.memory_space<vmem>>, vector<16x32xf32>
    tpu.vector_store %arg5[%c0_12, %c0_13], %41 {strides = array<i32>} : memref<16x32xf32, #tpu.memory_space<vmem>>, vector<16x32xf32>,
    return
  }
  func.func @transform_0(%arg0: i32) -> (i32, i32) {
    %c0_i32 = arith.constant 0 : i32
    %c0_i32_0 = arith.constant 0 : i32
    return %arg0, %c0_i32 : i32, i32
  }
  func.func @transform_1(%arg0: i32) -> (i32, i32) {
    %c0_i32 = arith.constant 0 : i32
    %c0_i32_0 = arith.constant 0 : i32
    %c0_i32_1 = arith.constant 0 : i32
    return %c0_i32, %c0_i32_0 : i32, i32
  }
  func.func @transform_2(%arg0: i32) -> (i32, i32) {
    %c0_i32 = arith.constant 0 : i32
    %c0_i32_0 = arith.constant 0 : i32
    %c0_i32_1 = arith.constant 0 : i32
    return %c0_i32, %c0_i32_0 : i32, i32
  }
  func.func @transform_3(%arg0: i32) -> (i32, i32) {
    %c0_i32 = arith.constant 0 : i32
    %c0_i32_0 = arith.constant 0 : i32
    %c0_i32_1 = arith.constant 0 : i32
    return %c0_i32, %c0_i32_0 : i32, i32
  }
  func.func @transform_4(%arg0: i32) -> (i32, i32) {
    %c0_i32 = arith.constant 0 : i32
    %c0_i32_0 = arith.constant 0 : i32
    return %arg0, %c0_i32 : i32, i32
  }
}

</mosaic_0001>

<llo_original>
// kernel: tpu_custom_call.1
$region0: #{tpu_custom_call.1}
  #allocation0 [shape = 'u32[]', space=smem, size = 0x4, offset = 0x4, fixed_abs, tag = 'smem constant byte address 0x4 - core index']
  #allocation1 [shape = 'u32[72,128]{1,0:T(1,128)}', space=vmem, size = 0x9000, scoped, tag = 'internal scratch']
  %s0 = inlined_call_operand.vmem [shape: s32[16,3], index: 0, kind: input, shape index: {}]
  %s1 = inlined_call_operand.vmem [shape: f32[168,32], index: 1, kind: input, shape index: {}]
  %s2 = inlined_call_operand.vmem [shape: f32[1,32], index: 2, kind: input, shape index: {}]
  %s3 = inlined_call_operand.vmem [shape: f32[1,32], index: 3, kind: input, shape index: {}]
  %s4 = inlined_call_operand.hbm [shape: f32[16,32], index: 4, kind: output, shape index: {}]
  %s5 = sld [smem:[#allocation0]]
  $region26: #{tpu_custom_call.1} parent=0
    _
  %s7 = ssub.s32 1, %s5
  %s8 = scalar_select 0, %s7, %s5
  $region1: #{tpu_custom_call.1} parent=0
    #allocation2 [shape = 'u8[8192]{0}', space=vmem, size = 0x2000, scoped, tag = 'output window, operand 0, single buffered']
    #allocation3 [shape = 's32[1]{0}', space=sflag, size = 0x4, scoped, tag = 'scoped memory for tpu_custom_call.1']
    %9 = vsyncpa [#allocation3], 0
    // Predicated region
    $region2: #{tpu_custom_call.1} parent=1 // pred_check
      _
    $region3: #{tpu_custom_call.1} parent=1 // pred_check_branch
      %11 = sbr.rel (0) target = $region5
    $region4: #{tpu_custom_call.1} parent=1 // pred_region
      _
    $region5: #{tpu_custom_call.1} parent=1 // pred_fallthru
      _
    // Predicated region
    $region6: #{tpu_custom_call.1} parent=1 // pred_check
      _
    $region7: #{tpu_custom_call.1} parent=1 // pred_check_branch
      %13 = sbr.rel (0) target = $region9
    $region8: #{tpu_custom_call.1} parent=1 // pred_region
      _
    $region9: #{tpu_custom_call.1} parent=1 // pred_fallthru
      _
    // Predicated region
    $region10: #{tpu_custom_call.1} parent=1 // pred_check
      _
    $region11: #{tpu_custom_call.1} parent=1 // pred_check_branch
      %15 = sbr.rel (0) target = $region13
    $region12: #{tpu_custom_call.1} parent=1 // pred_region
      _
    $region13: #{tpu_custom_call.1} parent=1 // pred_fallthru
      _
    // Predicated region
    $region14: #{tpu_custom_call.1} parent=1 // pred_check
      _
    $region15: #{tpu_custom_call.1} parent=1 // pred_check_branch
      %17 = sbr.rel (0) target = $region17
    $region16: #{tpu_custom_call.1} parent=1 // pred_region
      _
    $region17: #{tpu_custom_call.1} parent=1 // pred_fallthru
      _
    %v18 = vld [vmem:[%s0] sm:$0xff]
    %v19 = vld [vmem:[%s0 + $0x8] sm:$0xff]
    %v20 = vlaneseq
    %v21 = vand.u32 %v20, 127
    %v22 = vadd.s32 %v21, 128
    %23 = vset.pattern.permute.xlu0 0
    %24 = vperm.xlu0 %23, %v18
    %v25 = vpop.permute.xlu0 %24
    %26 = vset.pattern.permute.xlu0 0
    %27 = vperm.xlu0 %26, %v19
    %v28 = vpop.permute.xlu0 %27
    %vm29 = vcmp.eq.s32.totalorder %v21, %v25
    %vm30 = vcmp.eq.s32.totalorder %v22, %v25
    %vm31 = vcmp.eq.s32.totalorder %v21, %v28
    %vm32 = vcmp.eq.s32.totalorder %v22, %v28
    %33 = vset.pattern.permute.xlu0 1
    %34 = vperm.xlu0 %33, %v18
    %v35 = vpop.permute.xlu0 %34
    %36 = vset.pattern.permute.xlu0 1
    %37 = vperm.xlu0 %36, %v19
    %v38 = vpop.permute.xlu0 %37
    %vm39 = vcmp.eq.s32.totalorder %v21, %v35
    %vm40 = vcmp.eq.s32.totalorder %v22, %v35
    %vm41 = vcmp.eq.s32.totalorder %v21, %v38
    %vm42 = vcmp.eq.s32.totalorder %v22, %v38
    %vm43 = vmor %vm29, %vm39
    %vm44 = vmor %vm30, %vm40
    %vm45 = vmor %vm31, %vm41
    %vm46 = vmor %vm32, %vm42
    %47 = vset.pattern.permute.xlu0 2
    %48 = vperm.xlu0 %47, %v18
    %v49 = vpop.permute.xlu0 %48
    %50 = vset.pattern.permute.xlu0 2
    %51 = vperm.xlu0 %50, %v19
    %v52 = vpop.permute.xlu0 %51
    %vm53 = vcmp.eq.s32.totalorder %v21, %v49
    %vm54 = vcmp.eq.s32.totalorder %v22, %v49
    %vm55 = vcmp.eq.s32.totalorder %v21, %v52
    %vm56 = vcmp.eq.s32.totalorder %v22, %v52
    %vm57 = vmor %vm43, %vm53
    %vm58 = vmor %vm44, %vm54
    %vm59 = vmor %vm45, %vm55
    %vm60 = vmor %vm46, %vm56
    %v61 = vsel %vm57, 1, 0
    %v62 = vsel %vm58, 1, 0
    %v63 = vsel %vm59, 1, 0
    %v64 = vsel %vm60, 1, 0
    %v65 = vcvt.s32.f32 %v61
    %v66 = vcvt.s32.f32 %v62
    %v67 = vcvt.s32.f32 %v63
    %v68 = vcvt.s32.f32 %v64
    %v69 = vpack.c.bf16 %v67, %v65
    %v70 = vpack.c.bf16 %v68, %v66
    %v71 = vld [vmem:[%s1] sm:$0xff]
    %v72 = vld [vmem:[%s1 + $0x8] sm:$0xff]
    %v73 = vld [vmem:[%s1 + $0x10] sm:$0xff]
    %v74 = vld [vmem:[%s1 + $0x18] sm:$0xff]
    %v75 = vld [vmem:[%s1 + $0x20] sm:$0xff]
    %v76 = vld [vmem:[%s1 + $0x28] sm:$0xff]
    %v77 = vld [vmem:[%s1 + $0x30] sm:$0xff]
    %v78 = vld [vmem:[%s1 + $0x38] sm:$0xff]
    %v79 = vld [vmem:[%s1 + $0x40] sm:$0xff]
    %v80 = vld [vmem:[%s1 + $0x48] sm:$0xff]
    %v81 = vld [vmem:[%s1 + $0x50] sm:$0xff]
    %v82 = vld [vmem:[%s1 + $0x58] sm:$0xff]
    %v83 = vld [vmem:[%s1 + $0x60] sm:$0xff]
    %v84 = vld [vmem:[%s1 + $0x68] sm:$0xff]
    %v85 = vld [vmem:[%s1 + $0x70] sm:$0xff]
    %v86 = vld [vmem:[%s1 + $0x78] sm:$0xff]
    %v87 = vld [vmem:[%s1 + $0x80] sm:$0xff]
    %v88 = vld [vmem:[%s1 + $0x88] sm:$0xff]
    %v89 = vld [vmem:[%s1 + $0x90] sm:$0xff]
    %v90 = vld [vmem:[%s1 + $0x98] sm:$0xff]
    %v91 = vld [vmem:[%s1 + $0xa0] sm:$0xff]
    %vm92 = vcmask 326656
    %v94 = vsel %vm92, %v70, 0
    %96 = vmatpush.msra.mxu0 %v86
    %97 = vmatpush.msra.mxu0 %v85
    %98 = vmatpush.msra.mxu0 %v84
    %99 = vmatpush.msra.mxu0 %v83
    %100 = vmatpush.msra.mxu0 %v82
    %101 = vmatpush.msra.mxu0 %v81
    %102 = vmatpush.msra.mxu0 %v80
    %103 = vmatpush.msra.mxu0 %v79
    %104 = vmatpush.msra.mxu0 %v78
    %105 = vmatpush.msra.mxu0 %v77
    %106 = vmatpush.msra.mxu0 %v76
    %107 = vmatpush.msra.mxu0 %v75
    %108 = vmatpush.msra.mxu0 %v74
    %109 = vmatpush.msra.mxu0 %v73
    %110 = vmatpush.msra.mxu0 %v72
    %111 = vmatpush.msra.mxu0 %v71
    %112 = vmatmul.bf16.gmra.mxu0 %v69
    %v113 = vpop.f32.mrf.mxu0
    %v114 = vadd.f32 0.0, %v113
    %v115 = vpop.f32.mrf.mxu0
    %v116 = vadd.f32 0.0, %v115
    %117 = vdwg.mxu0
    %118 = vmatpush.msra.mxu0 0.0
    %119 = vmatpush.msra.mxu0 0.0
    %120 = vmatpush.msra.mxu0 0.0
    %121 = vmatpush.msra.mxu0 0.0
    %122 = vmatpush.msra.mxu0 0.0
    %123 = vmatpush.msra.mxu0 0.0
    %124 = vmatpush.msra.mxu0 0.0
    %125 = vmatpush.msra.mxu0 0.0
    %126 = vmatpush.msra.mxu0 0.0
    %127 = vmatpush.msra.mxu0 0.0
    %128 = vmatpush.msra.mxu0 0.0
    %129 = vmatpush.msra.mxu0 %v91
    %130 = vmatpush.msra.mxu0 %v90
    %131 = vmatpush.msra.mxu0 %v89
    %132 = vmatpush.msra.mxu0 %v88
    %133 = vmatpush.msra.mxu0 %v87
    %134 = vmatmul.bf16.gmra.mxu0 %v94
    %v135 = vpop.f32.mrf.mxu0
    %v136 = vadd.f32 %v114, %v135
    %v137 = vpop.f32.mrf.mxu0
    %v138 = vadd.f32 %v116, %v137
    %139 = vdwg.mxu0
    %vm140 = vcmask 261120
    %v141 = vsel %vm140, %v136, 0.0
    %142 = vadd.xlane.f32.xlu0 %v141
    %v143 = vpop.xlane.xlu0 %142
    %v144 = vsel %vm140, %v138, 0.0
    %145 = vadd.xlane.f32.xlu0 %v144
    %v146 = vpop.xlane.xlu0 %145
    %v147 = vmul.f32 %v136, %v136
    %v148 = vmul.f32 %v138, %v138
    %v149 = vsel %vm140, %v147, 0.0
    %150 = vadd.xlane.f32.xlu0 %v149
    %v151 = vpop.xlane.xlu0 %150
    %v152 = vsel %vm140, %v148, 0.0
    %153 = vadd.xlane.f32.xlu0 %v152
    %v154 = vpop.xlane.xlu0 %153
    %v155 = vmul.f32 %v143, 0.03125
    %v156 = vmul.f32 %v146, 0.03125
    %v157 = vmul.f32 %v151, 0.03125
    %v158 = vmul.f32 %v154, 0.03125
    %v159 = vmul.f32 %v155, %v155
    %v160 = vmul.f32 %v156, %v156
    %v161 = vsub.f32 %v157, %v159
    %v162 = vsub.f32 %v158, %v160
    %v163 = vsub.f32 %v136, %v155
    %v164 = vsub.f32 %v138, %v156
    %v165 = vadd.f32 %v161, 1e-05
    %v166 = vadd.f32 %v162, 1e-05
    %v167 = vrsqrt.pop %v165
    %v168 = vmul.f32 %v167, %v165
    %v169 = vmul.f32 %v168, %v167
    %v170 = vmul.f32 0.5, %v169
    %v171 = vsub.f32 1.5, %v170
    %v172 = vmul.f32 %v167, %v171
    %vm173 = vweird.f32 %v165
    %vm174 = vweird.f32 %v167
    %vm175 = vmor %vm173, %vm174
    %v176 = vsel %vm175, %v167, %v172
    %v177 = vrsqrt.pop %v166
    %v178 = vmul.f32 %v177, %v166
    %v179 = vmul.f32 %v178, %v177
    %v180 = vmul.f32 0.5, %v179
    %v181 = vsub.f32 1.5, %v180
    %v182 = vmul.f32 %v177, %v181
    %vm183 = vweird.f32 %v166
    %vm184 = vweird.f32 %v177
    %vm185 = vmor %vm183, %vm184
    %v186 = vsel %vm185, %v177, %v182
    %v187 = vmul.f32 %v163, %v176
    %v188 = vmul.f32 %v164, %v186
    %v189 = vld [vmem:[%s2] sm:$0x1]
    %v191 = vperm.slane %v189, 0
    %v193 = vmul.f32 %v187, %v191
    %v194 = vmul.f32 %v188, %v191
    %v195 = vld [vmem:[%s3] sm:$0x1]
    %v197 = vperm.slane %v195, 0
    %v199 = vadd.f32 %v193, %v197
    %v200 = vadd.f32 %v194, %v197
    %201 = vst.msk [vmem:[#allocation2] sm:$0xff] %vm140, %v199
    %202 = vst.msk [vmem:[#allocation2 + $0x8] sm:$0xff] %vm140, %v200
    // Predicated region
    $region18: #{tpu_custom_call.1} parent=1 // pred_check
      _
    $region19: #{tpu_custom_call.1} parent=1 // pred_check_branch
      %204 = sbr.rel (0) target = $region21
    $region20: #{tpu_custom_call.1} parent=1 // pred_region
      %206 = vsyncadd [#allocation3], 0
      %s207 = sshll.u32 [#allocation2], 4
      %s208 = int_to_ptr.vmem [resolvable:$true] %s207
      %s209 = sshll.u32 %s4, 4
      %s210 = int_to_ptr.hbm [resolvable:$true] %s209
      %215 = dma.vmem_to_hbm [thread:$0]  %s208, 256, %s210, [#allocation3], 128, 128, 8
    $region21: #{tpu_custom_call.1} parent=1 // pred_fallthru
      _
    // Predicated region
    $region22: #{tpu_custom_call.1} parent=1 // pred_check
      _
    $region23: #{tpu_custom_call.1} parent=1 // pred_check_branch
      %217 = sbr.rel (0) target = $region25
    $region24: #{tpu_custom_call.1} parent=1 // pred_region
      %219 = dma.done [#allocation3], 256
    $region25: #{tpu_custom_call.1} parent=1 // pred_fallthru
      _
    %220 = vsyncpa [#allocation3], 1

</llo_original>
